<compile_context>
chip_gen: v6e
topology: v6e:2x2x1
jax: 0.10.0
libtpu: 0.0.40
codegen_flags: <defaults>
</compile_context>

<pallas_src>
import functools

import jax
import jax.numpy as jnp
from jax import lax
from jax.experimental import pallas as pl
from jax.experimental.pallas import tpu as pltpu

EPS = 1e-5
IGNORE_INDEX = 255


def _acw_sums_kernel(tgt_ref, logit_ref, out_ref,
                     acc_cls, acc_int, acc_pv, acc_pnc, *,
                     num_classes, eps, ignore_index, hw, tile_m, jpp,
                     has_tail):
    """Accumulates per-class sums over the lane tiles of one (image, chunk).

    out_ref (1,1,C,4): [...,0]=sum(one_hot)        [...,1]=sum(pred*one_hot)
                       [...,2]=sum(pred*valid)     [...,3]=sum((valid+pv+one_hot)*pnc)
    """
    j = pl.program_id(2)

    @pl.when(j == 0)
    def _():
        acc_cls[...] = jnp.zeros_like(acc_cls)
        acc_int[...] = jnp.zeros_like(acc_int)
        acc_pv[...] = jnp.zeros_like(acc_pv)
        acc_pnc[...] = jnp.zeros_like(acc_pnc)

    logits = logit_ref[...].astype(jnp.float32)            # (C, tm)
    tgt = tgt_ref[...].astype(jnp.int32)                    # (1, tm)

    not_ignored = tgt != ignore_index                       # (1, tm) bool
    if has_tail:
        # Lane-tail mask: only needed when HW % tile != 0 (trace-time check).
        # The logit sanitize is load-bearing: Pallas block padding can carry
        # garbage/NaN which would poison the lane reductions via NaN*0.
        j_global = pl.program_id(1) * jpp + j
        col = j_global * tile_m + lax.broadcasted_iota(jnp.int32, (1, tile_m), 1)
        in_bounds = col < hw                                 # (1, tm)
        logits = jnp.where(in_bounds, logits, 0.0)
        not_ignored = jnp.logical_and(not_ignored, in_bounds)

    # Softmax over the class axis (sublanes).  Per-pixel (1,tm) approx EUP
    # reciprocal + Newton refinement (nearly free on the (1,tm) shape),
    # broadcast-multiplied over classes — avoids a (C,tm) divide.
    m = jnp.max(logits, axis=0, keepdims=True)
    e = jnp.exp(logits - m)
    denom = jnp.sum(e, axis=0, keepdims=True)               # (1, tm)
    inv = pl.reciprocal(denom, approx=True)
    inv = inv * (2.0 - denom * inv)
    inv = inv * (2.0 - denom * inv)
    pred = e * inv                                           # (C, tm)

    valid = jnp.where(not_ignored, 1.0, 0.0)                 # (1, tm) f32
    class_ids = lax.broadcasted_iota(jnp.int32, (num_classes, tile_m), 0)
    # Single select: one_hot already folds in the valid mask.
    one_hot = jnp.where(jnp.logical_and(class_ids == tgt, not_ignored),
                        1.0, 0.0)                            # (C, tm)

    err = (one_hot - pred) ** 2
    # log((1-err+eps)/(1+err+eps)) as a difference of logs (no f32 divide).
    pnc = err - jnp.log((1.0 + eps) - err) + jnp.log((1.0 + eps) + err)

    pv = pred * valid                                        # (C, tm)

    # Plain elementwise += on (C,1) scratch refs (no lane placement per tile).
    acc_cls[...] += jnp.sum(one_hot, axis=1, keepdims=True)
    acc_int[...] += jnp.sum(pred * one_hot, axis=1, keepdims=True)
    acc_pv[...] += jnp.sum(pv, axis=1, keepdims=True)
    acc_pnc[...] += jnp.sum((valid + pv + one_hot) * pnc, axis=1, keepdims=True)

    @pl.when(j == pl.num_programs(2) - 1)
    def _():
        out_ref[:, :, :, 0:1] = acc_cls[...][None, None]
        out_ref[:, :, :, 1:2] = acc_int[...][None, None]
        out_ref[:, :, :, 2:3] = acc_pv[...][None, None]
        out_ref[:, :, :, 3:4] = acc_pnc[...][None, None]


def acw_loss(prediction, target, *, ini_weight=0.0, ini_iteration=0,
             eps=EPS, ignore_index=IGNORE_INDEX, tile_m=None):
    """prediction: (N, C, H, W) float logits; target: (N, H, W) int labels."""
    N, C, H, W = prediction.shape
    HW = H * W
    M = N * HW

    # Free reshapes only — no HBM transpose.  Keep bf16 inputs as bf16.
    if prediction.dtype not in (jnp.bfloat16, jnp.float32):
        prediction = prediction.astype(jnp.float32)
    logits = prediction.reshape(N, C, HW)

    # Labels as uint8 when they fit (ignore_index=255 does) -> 4x fewer
    # label bytes from HBM (v5e is the HBM-roofline generation).
    ign = -1 if ignore_index is None else int(ignore_index)
    use_u8 = (C <= 255) and (ign < 256)
    tgt_dtype = jnp.uint8 if use_u8 else jnp.int32
    tgt = target.reshape(N, 1, HW).astype(tgt_dtype)

    in_itemsize = jnp.dtype(logits.dtype).itemsize
    tgt_itemsize = jnp.dtype(tgt_dtype).itemsize

    # ---- Tile selection: adaptive to C, clamped by HW and a VMEM budget ----
    hw_pad = pl.cdiv(HW, 128) * 128
    if tile_m is None:
        tile_req = 8192 if C <= 8 else (4096 if C <= 32 else 2048)
    else:
        tile_req = int(tile_m)
    # Rough per-lane-column footprint: double-buffered inputs + ~10 f32 temps.
    per_col = C * (2 * in_itemsize + 40) + 2 * tgt_itemsize
    budget = 28 << 20
    tile_budget = max(128, (budget // per_col) // 128 * 128)
    tile = int(min(tile_req, tile_budget, hw_pad))
    tile = max(128, (tile // 128) * 128)

    grid_j = pl.cdiv(HW, tile)
    # Extra parallel axis over HW chunks so both v7x TensorCores get work
    # even when N==1 / odd N.  Only split when the tile count divides evenly.
    n_par = 2 if (grid_j >= 2 and grid_j % 2 == 0) else 1
    jpp = grid_j // n_par
    has_tail = (HW % tile) != 0

    kernel = functools.partial(
        _acw_sums_kernel, num_classes=C, eps=eps, ignore_index=ign,
        hw=HW, tile_m=tile, jpp=jpp, has_tail=has_tail)

    # Explicit VMEM budgeting (v7x: 64 MiB physical; v5e: 16 MiB default scoped).
    block_bytes = C * tile * in_itemsize + tile * tgt_itemsize
    vmem_needed = 2 * block_bytes + 10 * C * tile * 4 + (4 << 20)
    vmem_limit = int(min(max(vmem_needed, 32 << 20), 64 << 20))

    cost = pl.CostEstimate(
        flops=22 * C * M,
        transcendentals=3 * C * M,
        bytes_accessed=logits.size * in_itemsize + tgt.size * tgt_itemsize
        + N * n_par * C * 4 * 4)

    partials = pl.pallas_call(
        kernel,
        out_shape=jax.ShapeDtypeStruct((N, n_par, C, 4), jnp.float32),
        grid_spec=pltpu.PrefetchScalarGridSpec(
            num_scalar_prefetch=0,
            grid=(N, n_par, jpp),
            in_specs=[
                pl.BlockSpec((pl.Squeezed(), 1, tile),
                             lambda n, p, j: (n, 0, p * jpp + j)),
                pl.BlockSpec((pl.Squeezed(), C, tile),
                             lambda n, p, j: (n, 0, p * jpp + j)),
            ],
            out_specs=pl.BlockSpec((1, 1, C, 4), lambda n, p, j: (n, p, 0, 0)),
            scratch_shapes=[pltpu.VMEM((C, 1), jnp.float32)] * 4,
        ),
        compiler_params=pltpu.CompilerParams(
            dimension_semantics=("parallel", "parallel", "arbitrary"),
            vmem_limit_bytes=vmem_limit),
        cost_estimate=cost,
    )(tgt, logits)

    sums = jnp.sum(partials, axis=(0, 1))            # (C, 4) per-class totals
    sum_class = sums[:, 0]
    intersection = 2.0 * sums[:, 1] + eps
    union = sums[:, 2] + sum_class + eps             # sum(pred*valid) + sum(one_hot)
    s_pnc = sums[:, 3]

    # adaptive_class_weight tail (tiny O(C) math, plain JAX).  The PyTorch
    # module's stateful running weight/iteration is passed in functionally.
    itr = ini_iteration + 1
    sum_norm = sum_class / jnp.sum(sum_class)
    weight = (ini_weight * (itr - 1) + sum_norm) / itr
    mfb = jnp.mean(weight) / (weight + eps)
    mfb = mfb / jnp.sum(mfb)

    loss_pnc_mean = jnp.dot(mfb, s_pnc) / M          # mean over (N,H,W) of sum_c acw*pnc
    dice = intersection / union
    return loss_pnc_mean - jnp.log(jnp.mean(dice))


def acw_loss_ref(prediction, target, eps=EPS, ignore_index=IGNORE_INDEX):
    """Pure-JAX reference mirroring the PyTorch forward (itr=1, ini_weight=0)."""
    N, C, H, W = prediction.shape
    pred = jax.nn.softmax(prediction.astype(jnp.float32), axis=1)
    mask2d = target == ignore_index
    tgt_c = jnp.where(mask2d, 0, target)
    one_hot = jax.nn.one_hot(tgt_c, C, axis=1, dtype=jnp.float32)
    valid = jnp.where(mask2d, 0.0, 1.0)[:, None, :, :]
    one_hot = one_hot * valid

    sum_class = jnp.sum(one_hot, axis=(0, 2, 3))
    weight = sum_class / jnp.sum(sum_class)
    mfb = jnp.mean(weight) / (weight + eps)
    mfb = mfb / jnp.sum(mfb)
    acw = (1.0 + pred + one_hot) * mfb[None, :, None, None] * valid

    err = (one_hot - pred) ** 2
    pnc = err - jnp.log((1.0 - err + eps) / (1.0 + err + eps))
    loss_pnc = jnp.sum(acw * pnc, axis=1)

    intersection = 2.0 * jnp.sum(pred * one_hot, axis=(0, 2, 3)) + eps
    union = jnp.sum((pred + one_hot) * valid, axis=(0, 2, 3)) + eps
    dice = intersection / union
    return jnp.mean(loss_pnc) - jnp.log(jnp.mean(dice))


if __name__ == "__main__":
    key = jax.random.PRNGKey(0)

    def make_inputs(k, N, C, H, W):
        k1, k2, k3 = jax.random.split(k, 3)
        pred = jax.random.normal(k1, (N, C, H, W), dtype=jnp.float32)
        tgt = jax.random.randint(k2, (N, H, W), 0, C).astype(jnp.int32)
        ign = jax.random.bernoulli(k3, 0.1, (N, H, W))
        tgt = jnp.where(ign, IGNORE_INDEX, tgt)
        return pred, tgt

    k0, k1, k2 = jax.random.split(key, 3)

    # Case 1: adaptive tile, single-tile grid, HW divides tile (no tail path).
    p, t = make_inputs(k0, 2, 4, 16, 16)
    loss = jax.block_until_ready(acw_loss(p, t))
    ref = acw_loss_ref(p, t)
    assert jnp.allclose(loss, ref, atol=2e-5, rtol=2e-5), (float(loss), float(ref))

    # Case 2: multi-tile, even tile count -> 2-way HW-parallel axis, no tail.
    p, t = make_inputs(k1, 2, 4, 16, 32)
    loss = jax.block_until_ready(acw_loss(p, t, tile_m=128))
    ref = acw_loss_ref(p, t)
    assert jnp.allclose(loss, ref, atol=2e-5, rtol=2e-5), (float(loss), float(ref))

    # Case 3: N=1, ragged HW -> lane-tail mask path + HW-parallel split.
    p, t = make_inputs(k2, 1, 5, 13, 11)
    loss = jax.block_until_ready(acw_loss(p, t, tile_m=128))
    ref = acw_loss_ref(p, t)
    assert jnp.allclose(loss, ref, atol=2e-5, rtol=2e-5), (float(loss), float(ref))

    # Case 4: bf16 logits path (kernel sees bf16 on the wire; f32 reference
    # evaluated on the same rounded values).
    p, t = make_inputs(k0, 2, 4, 16, 16)
    p_bf = p.astype(jnp.bfloat16)
    loss = jax.block_until_ready(acw_loss(p_bf, t))
    ref = acw_loss_ref(p_bf.astype(jnp.float32), t)
    assert jnp.allclose(loss, ref, atol=1e-3, rtol=1e-3), (float(loss), float(ref))

    print("KERNEL_OK")
</pallas_src>

<mosaic_0001>
module attributes {stable_mosaic.version = 11 : i64} {
  func.func @_acw_sums_kernel(%arg0: i32, %arg1: i32, %arg2: i32, %arg3: memref<1x1x256xi8, #tpu.memory_space<vmem>>, %arg4: memref<1x4x256xf32, #tpu.memory_space<vmem>>, %arg5: memref<1x1x4x4xf32, #tpu.memory_space<vmem>>, %arg6: memref<4x1xf32, #tpu.memory_space<vmem>>, %arg7: memref<4x1xf32, #tpu.memory_space<vmem>>, %arg8: memref<4x1xf32, #tpu.memory_space<vmem>>, %arg9: memref<4x1xf32, #tpu.memory_space<vmem>>) attributes {dimension_semantics = [#tpu.dimension_semantics<parallel>, #tpu.dimension_semantics<parallel>, #tpu.dimension_semantics<arbitrary>], iteration_bounds = array<i64: 2, 1, 1>, scalar_prefetch = 0 : i64, scratch_operands = 4 : i64, tpu.core_type = #tpu.core_type<tc>, window_params = [{transform_indices = @transform_0, window_bounds = array<i64: 1, 1, 256>}, {transform_indices = @transform_1, window_bounds = array<i64: 1, 4, 256>}, {transform_indices = @transform_2, window_bounds = array<i64: 1, 1, 4, 4>}]} {
    %c0_i32 = arith.constant 0 : i32
    %0 = arith.cmpi eq, %arg2, %c0_i32 : i32
    %1 = arith.extui %0 : i1 to i32
    %c0_i32_0 = arith.constant 0 : i32
    %2 = arith.cmpi ne, %1, %c0_i32_0 : i32
    scf.if %2 {
      %cst_37 = arith.constant 0.000000e+00 : f32
      %79 = vector.broadcast %cst_37 : f32 to vector<4x1xf32>
      %c0_38 = arith.constant 0 : index
      %c0_39 = arith.constant 0 : index
      %80 = vector.load %arg6[%c0_38, %c0_39] : memref<4x1xf32, #tpu.memory_space<vmem>>, vector<4x1xf32>
      tpu.vector_store %arg6[%c0_38, %c0_39], %79 {strides = array<i32>} : memref<4x1xf32, #tpu.memory_space<vmem>>, vector<4x1xf32>,
      %cst_40 = arith.constant 0.000000e+00 : f32
      %81 = vector.broadcast %cst_40 : f32 to vector<4x1xf32>
      %c0_41 = arith.constant 0 : index
      %c0_42 = arith.constant 0 : index
      %82 = vector.load %arg7[%c0_41, %c0_42] : memref<4x1xf32, #tpu.memory_space<vmem>>, vector<4x1xf32>
      tpu.vector_store %arg7[%c0_41, %c0_42], %81 {strides = array<i32>} : memref<4x1xf32, #tpu.memory_space<vmem>>, vector<4x1xf32>,
      %cst_43 = arith.constant 0.000000e+00 : f32
      %83 = vector.broadcast %cst_43 : f32 to vector<4x1xf32>
      %c0_44 = arith.constant 0 : index
      %c0_45 = arith.constant 0 : index
      %84 = vector.load %arg8[%c0_44, %c0_45] : memref<4x1xf32, #tpu.memory_space<vmem>>, vector<4x1xf32>
      tpu.vector_store %arg8[%c0_44, %c0_45], %83 {strides = array<i32>} : memref<4x1xf32, #tpu.memory_space<vmem>>, vector<4x1xf32>,
      %cst_46 = arith.constant 0.000000e+00 : f32
      %85 = vector.broadcast %cst_46 : f32 to vector<4x1xf32>
      %c0_47 = arith.constant 0 : index
      %c0_48 = arith.constant 0 : index
      %86 = vector.load %arg9[%c0_47, %c0_48] : memref<4x1xf32, #tpu.memory_space<vmem>>, vector<4x1xf32>
      tpu.vector_store %arg9[%c0_47, %c0_48], %85 {strides = array<i32>} : memref<4x1xf32, #tpu.memory_space<vmem>>, vector<4x1xf32>,
    } else {
    }
    %c0 = arith.constant 0 : index
    %c0_1 = arith.constant 0 : index
    %c0_2 = arith.constant 0 : index
    %3 = vector.load %arg4[%c0, %c0_1, %c0_2] : memref<1x4x256xf32, #tpu.memory_space<vmem>>, vector<1x4x256xf32>
    %4 = vector.shape_cast %3 : vector<1x4x256xf32> to vector<4x256xf32>
    %c0_3 = arith.constant 0 : index
    %c0_4 = arith.constant 0 : index
    %c0_5 = arith.constant 0 : index
    %5 = vector.load %arg3[%c0_3, %c0_4, %c0_5] : memref<1x1x256xi8, #tpu.memory_space<vmem>>, vector<1x1x256xi8>
    %6 = vector.shape_cast %5 : vector<1x1x256xi8> to vector<1x256xi8>
    %7 = arith.extui %6 : vector<1x256xi8> to vector<1x256xi32>
    %c255_i32 = arith.constant 255 : i32
    %8 = vector.broadcast %c255_i32 : i32 to vector<1x256xi32>
    %9 = arith.cmpi ne, %7, %8 : vector<1x256xi32>
    %cst = arith.constant dense<0xFF800000> : vector<256xf32>
    %10 = vector.multi_reduction <maximumf>, %4, %cst [0] : vector<4x256xf32> to vector<256xf32>
    %11 = vector.shape_cast %10 : vector<256xf32> to vector<1x256xf32>
    %12 = vector.broadcast %11 : vector<1x256xf32> to vector<4x256xf32>
    %13 = arith.subf %4, %12 : vector<4x256xf32>
    %14 = math.exp %13 : vector<4x256xf32>
    %cst_6 = arith.constant dense<0.000000e+00> : vector<256xf32>
    %15 = vector.multi_reduction <add>, %14, %cst_6 [0] : vector<4x256xf32> to vector<256xf32>
    %16 = vector.shape_cast %15 : vector<256xf32> to vector<1x256xf32>
    %17 = tpu.reciprocal %16 {approx = true} : vector<1x256xf32> -> vector<1x256xf32>
    %18 = arith.mulf %16, %17 : vector<1x256xf32>
    %cst_7 = arith.constant 2.000000e+00 : f32
    %19 = vector.broadcast %cst_7 : f32 to vector<1x256xf32>
    %20 = arith.subf %19, %18 : vector<1x256xf32>
    %21 = arith.mulf %17, %20 : vector<1x256xf32>
    %22 = arith.mulf %16, %21 : vector<1x256xf32>
    %cst_8 = arith.constant 2.000000e+00 : f32
    %23 = vector.broadcast %cst_8 : f32 to vector<1x256xf32>
    %24 = arith.subf %23, %22 : vector<1x256xf32>
    %25 = arith.mulf %21, %24 : vector<1x256xf32>
    %26 = vector.broadcast %25 : vector<1x256xf32> to vector<4x256xf32>
    %27 = arith.mulf %14, %26 : vector<4x256xf32>
    %cst_9 = arith.constant 1.000000e+00 : f32
    %cst_10 = arith.constant 0.000000e+00 : f32
    %28 = vector.broadcast %cst_9 : f32 to vector<1x256xf32>
    %29 = vector.broadcast %cst_10 : f32 to vector<1x256xf32>
    %30 = arith.select %9, %28, %29 : vector<1x256xi1>, vector<1x256xf32>
    %31 = tpu.iota {dimensions = array<i32: 0>} : vector<4x256xi32>
    %32 = vector.broadcast %7 : vector<1x256xi32> to vector<4x256xi32>
    %33 = arith.cmpi eq, %31, %32 : vector<4x256xi32>
    %34 = vector.broadcast %9 : vector<1x256xi1> to vector<4x256xi1>
    %35 = arith.andi %33, %34 : vector<4x256xi1>
    %cst_11 = arith.constant 1.000000e+00 : f32
    %cst_12 = arith.constant 0.000000e+00 : f32
    %36 = vector.broadcast %cst_11 : f32 to vector<4x256xf32>
    %37 = vector.broadcast %cst_12 : f32 to vector<4x256xf32>
    %38 = arith.select %35, %36, %37 : vector<4x256xi1>, vector<4x256xf32>
    %39 = arith.subf %38, %27 : vector<4x256xf32>
    %40 = arith.mulf %39, %39 : vector<4x256xf32>
    %cst_13 = arith.constant 1.000010e+00 : f32
    %41 = vector.broadcast %cst_13 : f32 to vector<4x256xf32>
    %42 = arith.subf %41, %40 : vector<4x256xf32>
    %43 = math.log %42 : vector<4x256xf32>
    %44 = arith.subf %40, %43 : vector<4x256xf32>
    %cst_14 = arith.constant 1.000010e+00 : f32
    %45 = vector.broadcast %cst_14 : f32 to vector<4x256xf32>
    %46 = arith.addf %45, %40 : vector<4x256xf32>
    %47 = math.log %46 : vector<4x256xf32>
    %48 = arith.addf %44, %47 : vector<4x256xf32>
    %49 = vector.broadcast %30 : vector<1x256xf32> to vector<4x256xf32>
    %50 = arith.mulf %27, %49 : vector<4x256xf32>
    %c0_15 = arith.constant 0 : index
    %c0_16 = arith.constant 0 : index
    %51 = vector.load %arg6[%c0_15, %c0_16] : memref<4x1xf32, #tpu.memory_space<vmem>>, vector<4x1xf32>
    %cst_17 = arith.constant dense<0.000000e+00> : vector<4xf32>
    %52 = vector.multi_reduction <add>, %38, %cst_17 [1] : vector<4x256xf32> to vector<4xf32>
    %53 = vector.shape_cast %52 : vector<4xf32> to vector<4x1xf32>
    %54 = arith.addf %51, %53 : vector<4x1xf32>
    %c0_18 = arith.constant 0 : index
    %c0_19 = arith.constant 0 : index
    %55 = vector.load %arg6[%c0_18, %c0_19] : memref<4x1xf32, #tpu.memory_space<vmem>>, vector<4x1xf32>
    tpu.vector_store %arg6[%c0_18, %c0_19], %54 {strides = array<i32>} : memref<4x1xf32, #tpu.memory_space<vmem>>, vector<4x1xf32>,
    %c0_20 = arith.constant 0 : index
    %c0_21 = arith.constant 0 : index
    %56 = vector.load %arg7[%c0_20, %c0_21] : memref<4x1xf32, #tpu.memory_space<vmem>>, vector<4x1xf32>
    %57 = arith.mulf %27, %38 : vector<4x256xf32>
    %cst_22 = arith.constant dense<0.000000e+00> : vector<4xf32>
    %58 = vector.multi_reduction <add>, %57, %cst_22 [1] : vector<4x256xf32> to vector<4xf32>
    %59 = vector.shape_cast %58 : vector<4xf32> to vector<4x1xf32>
    %60 = arith.addf %56, %59 : vector<4x1xf32>
    %c0_23 = arith.constant 0 : index
    %c0_24 = arith.constant 0 : index
    %61 = vector.load %arg7[%c0_23, %c0_24] : memref<4x1xf32, #tpu.memory_space<vmem>>, vector<4x1xf32>
    tpu.vector_store %arg7[%c0_23, %c0_24], %60 {strides = array<i32>} : memref<4x1xf32, #tpu.memory_space<vmem>>, vector<4x1xf32>,
    %c0_25 = arith.constant 0 : index
    %c0_26 = arith.constant 0 : index
    %62 = vector.load %arg8[%c0_25, %c0_26] : memref<4x1xf32, #tpu.memory_space<vmem>>, vector<4x1xf32>
    %cst_27 = arith.constant dense<0.000000e+00> : vector<4xf32>
    %63 = vector.multi_reduction <add>, %50, %cst_27 [1] : vector<4x256xf32> to vector<4xf32>
    %64 = vector.shape_cast %63 : vector<4xf32> to vector<4x1xf32>
    %65 = arith.addf %62, %64 : vector<4x1xf32>
    %c0_28 = arith.constant 0 : index
    %c0_29 = arith.constant 0 : index
    %66 = vector.load %arg8[%c0_28, %c0_29] : memref<4x1xf32, #tpu.memory_space<vmem>>, vector<4x1xf32>
    tpu.vector_store %arg8[%c0_28, %c0_29], %65 {strides = array<i32>} : memref<4x1xf32, #tpu.memory_space<vmem>>, vector<4x1xf32>,
    %c0_30 = arith.constant 0 : index
    %c0_31 = arith.constant 0 : index
    %67 = vector.load %arg9[%c0_30, %c0_31] : memref<4x1xf32, #tpu.memory_space<vmem>>, vector<4x1xf32>
    %68 = vector.broadcast %30 : vector<1x256xf32> to vector<4x256xf32>
    %69 = arith.addf %68, %50 : vector<4x256xf32>
    %70 = arith.addf %69, %38 : vector<4x256xf32>
    %71 = arith.mulf %70, %48 : vector<4x256xf32>
    %cst_32 = arith.constant dense<0.000000e+00> : vector<4xf32>
    %72 = vector.multi_reduction <add>, %71, %cst_32 [1] : vector<4x256xf32> to vector<4xf32>
    %73 = vector.shape_cast %72 : vector<4xf32> to vector<4x1xf32>
    %74 = arith.addf %67, %73 : vector<4x1xf32>
    %c0_33 = arith.constant 0 : index
    %c0_34 = arith.constant 0 : index
    %75 = vector.load %arg9[%c0_33, %c0_34] : memref<4x1xf32, #tpu.memory_space<vmem>>, vector<4x1xf32>
    tpu.vector_store %arg9[%c0_33, %c0_34], %74 {strides = array<i32>} : memref<4x1xf32, #tpu.memory_space<vmem>>, vector<4x1xf32>,
    %c0_i32_35 = arith.constant 0 : i32
    %76 = arith.cmpi eq, %arg2, %c0_i32_35 : i32
    %77 = arith.extui %76 : i1 to i32
    %c0_i32_36 = arith.constant 0 : i32
    %78 = arith.cmpi ne, %77, %c0_i32_36 : i32
    scf.if %78 {
      %c0_37 = arith.constant 0 : index
      %c0_38 = arith.constant 0 : index
      %79 = vector.load %arg6[%c0_37, %c0_38] : memref<4x1xf32, #tpu.memory_space<vmem>>, vector<4x1xf32>
      %80 = vector.shape_cast %79 : vector<4x1xf32> to vector<1x1x4x1xf32>
      %c0_39 = arith.constant 0 : index
      %c0_40 = arith.constant 0 : index
      %c0_41 = arith.constant 0 : index
      %c0_42 = arith.constant 0 : index
      %81 = vector.load %arg5[%c0_39, %c0_40, %c0_41, %c0_42] : memref<1x1x4x4xf32, #tpu.memory_space<vmem>>, vector<1x1x4x1xf32>
      tpu.vector_store %arg5[%c0_39, %c0_40, %c0_41, %c0_42], %80 {strides = array<i32>} : memref<1x1x4x4xf32, #tpu.memory_space<vmem>>, vector<1x1x4x1xf32>,
      %c0_43 = arith.constant 0 : index
      %c0_44 = arith.constant 0 : index
      %82 = vector.load %arg7[%c0_43, %c0_44] : memref<4x1xf32, #tpu.memory_space<vmem>>, vector<4x1xf32>
      %83 = vector.shape_cast %82 : vector<4x1xf32> to vector<1x1x4x1xf32>
      %c0_45 = arith.constant 0 : index
      %c0_46 = arith.constant 0 : index
      %c0_47 = arith.constant 0 : index
      %c1 = arith.constant 1 : index
      %84 = vector.load %arg5[%c0_45, %c0_46, %c0_47, %c1] : memref<1x1x4x4xf32, #tpu.memory_space<vmem>>, vector<1x1x4x1xf32>
      tpu.vector_store %arg5[%c0_45, %c0_46, %c0_47, %c1], %83 {strides = array<i32>} : memref<1x1x4x4xf32, #tpu.memory_space<vmem>>, vector<1x1x4x1xf32>,
      %c0_48 = arith.constant 0 : index
      %c0_49 = arith.constant 0 : index
      %85 = vector.load %arg8[%c0_48, %c0_49] : memref<4x1xf32, #tpu.memory_space<vmem>>, vector<4x1xf32>
      %86 = vector.shape_cast %85 : vector<4x1xf32> to vector<1x1x4x1xf32>
      %c0_50 = arith.constant 0 : index
      %c0_51 = arith.constant 0 : index
      %c0_52 = arith.constant 0 : index
      %c2 = arith.constant 2 : index
      %87 = vector.load %arg5[%c0_50, %c0_51, %c0_52, %c2] : memref<1x1x4x4xf32, #tpu.memory_space<vmem>>, vector<1x1x4x1xf32>
      tpu.vector_store %arg5[%c0_50, %c0_51, %c0_52, %c2], %86 {strides = array<i32>} : memref<1x1x4x4xf32, #tpu.memory_space<vmem>>, vector<1x1x4x1xf32>,
      %c0_53 = arith.constant 0 : index
      %c0_54 = arith.constant 0 : index
      %88 = vector.load %arg9[%c0_53, %c0_54] : memref<4x1xf32, #tpu.memory_space<vmem>>, vector<4x1xf32>
      %89 = vector.shape_cast %88 : vector<4x1xf32> to vector<1x1x4x1xf32>
      %c0_55 = arith.constant 0 : index
      %c0_56 = arith.constant 0 : index
      %c0_57 = arith.constant 0 : index
      %c3 = arith.constant 3 : index
      %90 = vector.load %arg5[%c0_55, %c0_56, %c0_57, %c3] : memref<1x1x4x4xf32, #tpu.memory_space<vmem>>, vector<1x1x4x1xf32>
      tpu.vector_store %arg5[%c0_55, %c0_56, %c0_57, %c3], %89 {strides = array<i32>} : memref<1x1x4x4xf32, #tpu.memory_space<vmem>>, vector<1x1x4x1xf32>,
    } else {
    }
    return
  }
  func.func @transform_0(%arg0: i32, %arg1: i32, %arg2: i32) -> (i32, i32, i32) {
    %c1_i32 = arith.constant 1 : i32
    %0 = arith.muli %arg1, %c1_i32 : i32
    %1 = arith.addi %0, %arg2 : i32
    %c0_i32 = arith.constant 0 : i32
    %c0_i32_0 = arith.constant 0 : i32
    return %arg0, %c0_i32, %1 : i32, i32, i32
  }
  func.func @transform_1(%arg0: i32, %arg1: i32, %arg2: i32) -> (i32, i32, i32) {
    %c1_i32 = arith.constant 1 : i32
    %0 = arith.muli %arg1, %c1_i32 : i32
    %1 = arith.addi %0, %arg2 : i32
    %c0_i32 = arith.constant 0 : i32
    %c0_i32_0 = arith.constant 0 : i32
    return %arg0, %c0_i32, %1 : i32, i32, i32
  }
  func.func @transform_2(%arg0: i32, %arg1: i32, %arg2: i32) -> (i32, i32, i32, i32) {
    %c0_i32 = arith.constant 0 : i32
    %c0_i32_0 = arith.constant 0 : i32
    %c0_i32_1 = arith.constant 0 : i32
    return %arg0, %arg1, %c0_i32, %c0_i32_0 : i32, i32, i32, i32
  }
}

</mosaic_0001>

<llo_original>
// kernel: tpu_custom_call.1
$region0: #{tpu_custom_call.1}
  #allocation0 [shape = 'u32[]', space=smem, size = 0x4, offset = 0x4, fixed_abs, tag = 'smem constant byte address 0x4 - core index']
  #allocation1 [shape = 'u32[144,128]{1,0:T(1,128)}', space=vmem, size = 0x12000, scoped, tag = 'internal scratch']
  #allocation2 [shape = 'f32[4,1]{1,0:T(4,128)}', space=vmem, size = 0x800, scoped, tag = 'scratch operand']
  #allocation3 [shape = 'f32[4,1]{1,0:T(4,128)}', space=vmem, size = 0x800, scoped, tag = 'scratch operand']
  #allocation4 [shape = 'f32[4,1]{1,0:T(4,128)}', space=vmem, size = 0x800, scoped, tag = 'scratch operand']
  #allocation5 [shape = 'f32[4,1]{1,0:T(4,128)}', space=vmem, size = 0x800, scoped, tag = 'scratch operand']
  %s0 = inlined_call_operand.vmem [shape: u8[2,1,256], index: 0, kind: input, shape index: {}]
  %s1 = inlined_call_operand.hbm [shape: f32[2,4,256], index: 1, kind: input, shape index: {}]
  %s2 = inlined_call_operand.hbm [shape: f32[2,1,4,4], index: 2, kind: output, shape index: {}]
  %s3 = sld [smem:[#allocation0]]
  $region53: #{tpu_custom_call.1} parent=0
    _
  %s5 = ssub.s32 1, %s3
  %s6 = scalar_select 0, %s5, %s3
  $region1: #{tpu_custom_call.1} parent=0
    #allocation6 [shape = 'u8[8192]{0}', space=vmem, size = 0x2000, scoped, tag = 'input window, operand 1']
    #allocation7 [shape = 's32[2]{0}', space=sflag, size = 0x8, scoped, tag = 'scoped memory for tpu_custom_call.1']
    #allocation8 [shape = 's32[2]{0}', space=sflag, size = 0x8, scoped, tag = 'scoped memory for tpu_custom_call.1']
    #allocation9 [shape = 'u8[4096]{0}', space=vmem, size = 0x1000, scoped, tag = 'output window, operand 0']
    %7 = vsyncpa [#allocation7], 0
    %s8 = scalar_lea.sflag [#allocation7], 1
    %9 = vsyncpa %s8, 0
    %10 = vsyncpa [#allocation8], 0
    %s11 = scalar_lea.sflag [#allocation8], 1
    %12 = vsyncpa %s11, 0
    loop: start=0, step=1, limit=4
    $region2: #{tpu_custom_call.1} parent=1 // loop_pre_header
      _
    $region3: #{tpu_custom_call.1} parent=1 // loop_header
      %s14 = sphi 0, %s18
      %p15 = scmp.ge.s32.totalorder %s14, 4
      %s21 = sphi 0, %s40
      %s22 = sphi 0, %s36
      %s23 = sphi 0, %s32
      %s24 = sphi 0, %s21
      %s25 = sphi 0, %s22
      %s26 = sphi 0, %s23
      %s27 = sphi 0, %s24
      %s28 = sphi 0, %s25
      %s29 = sphi 0, %s26
      %s47 = sphi 0, %s49
      %s50 = sphi 0, %s47
      %s51 = sphi 0, %s50
      %s67 = sphi 0, %s51
      %s77 = sphi 0, %s79
      %s80 = sphi 0, %s77
      %s81 = sphi 0, %s80
      %s97 = sphi 0, %s81
      %s105 = sphi 0, %s107
      %s108 = sphi 0, %s105
      %s109 = sphi 0, %s108
      %s125 = sphi 0, %s109
    $region4: #{tpu_custom_call.1} parent=1 // loop_header_branch
      %17 = sbr.rel (%p15) target = $region8
    $region5: #{tpu_custom_call.1} parent=1 // loop_body
      %s19 = ssub.s32 %s14, 1
      %s20 = ssub.s32 %s14, 2
      %s30 = sadd.s32 1, %s23
      %p31 = scmp.ge.s32.totalorder %s30, 1
      %s32 = scalar_select %p31, 0, %s30
      %s33 = sadd.s32 1, %s22
      %s34 = scalar_select %p31, %s33, %s22
      %p35 = scmp.ge.s32.totalorder %s34, 1
      %s36 = scalar_select %p35, 0, %s34
      %s37 = sadd.s32 1, %s21
      %s38 = scalar_select %p35, %s37, %s21
      %p39 = scmp.ge.s32.totalorder %s38, 2
      %s40 = scalar_select %p39, 0, %s38
      %s41 = sadd.s32 %s22, %s23
      %s42 = sadd.s32 %s36, %s32
      %s43 = ssub.s32 %s21, %s40
      %s44 = ssub.s32 %s41, %s42
      %s45 = sor.u32 %s43, %s44
      %p46 = scmp.eq.s32.totalorder %s45, 0
      %s48 = sadd.s32 %s47, 1
      %s49 = scalar_select %p46, %s47, %s48
      %p52 = pneg %p46
      %p53 = scmp.eq.s32.totalorder %s14, 1
      %p54 = por %p52, %p53
      %p55 = scmp.ne.s32.totalorder %s47, %s50
      %p56 = scmp.eq.s32.totalorder %s14, 0
      %p57 = por %p55, %p56
      %p58 = scmp.ne.s32.totalorder %s47, %s50
      %p59 = scmp.eq.s32.totalorder %s19, 1
      %p60 = por %p58, %p59
      %p61 = scmp.ne.s32.totalorder %s50, %s51
      %p62 = scmp.eq.s32.totalorder %s19, 0
      %p63 = por %p61, %p62
      %p64 = scmp.ne.s32.totalorder %s50, %s51
      %p65 = scmp.eq.s32.totalorder %s20, 1
      %p66 = por %p64, %p65
      %p68 = scmp.ne.s32.totalorder %s51, %s67
      %p69 = scmp.eq.s32.totalorder %s20, 0
      %p70 = por %p68, %p69
      %s71 = sadd.s32 %s22, %s23
      %s72 = sadd.s32 %s36, %s32
      %s73 = ssub.s32 %s21, %s40
      %s74 = ssub.s32 %s71, %s72
      %s75 = sor.u32 %s73, %s74
      %p76 = scmp.eq.s32.totalorder %s75, 0
      %s78 = sadd.s32 %s77, 1
      %s79 = scalar_select %p76, %s77, %s78
      %p82 = pneg %p76
      %p83 = scmp.eq.s32.totalorder %s14, 1
      %p84 = por %p82, %p83
      %p85 = scmp.ne.s32.totalorder %s77, %s80
      %p86 = scmp.eq.s32.totalorder %s14, 0
      %p87 = por %p85, %p86
      %p88 = scmp.ne.s32.totalorder %s77, %s80
      %p89 = scmp.eq.s32.totalorder %s19, 1
      %p90 = por %p88, %p89
      %p91 = scmp.ne.s32.totalorder %s80, %s81
      %p92 = scmp.eq.s32.totalorder %s19, 0
      %p93 = por %p91, %p92
      %p94 = scmp.ne.s32.totalorder %s80, %s81
      %p95 = scmp.eq.s32.totalorder %s20, 1
      %p96 = por %p94, %p95
      %p98 = scmp.ne.s32.totalorder %s81, %s97
      %p99 = scmp.eq.s32.totalorder %s20, 0
      %p100 = por %p98, %p99
      %s101 = ssub.s32 %s21, %s40
      %s102 = ssub.s32 %s22, %s36
      %s103 = sor.u32 %s101, %s102
      %p104 = scmp.eq.s32.totalorder %s103, 0
      %s106 = sadd.s32 %s105, 1
      %s107 = scalar_select %p104, %s105, %s106
      %p110 = pneg %p104
      %p111 = scmp.eq.s32.totalorder %s14, 1
      %p112 = por %p110, %p111
      %p113 = scmp.ne.s32.totalorder %s105, %s108
      %p114 = scmp.eq.s32.totalorder %s14, 0
      %p115 = por %p113, %p114
      %p116 = scmp.ne.s32.totalorder %s105, %s108
      %p117 = scmp.eq.s32.totalorder %s19, 1
      %p118 = por %p116, %p117
      %p119 = scmp.ne.s32.totalorder %s108, %s109
      %p120 = scmp.eq.s32.totalorder %s19, 0
      %p121 = por %p119, %p120
      %p122 = scmp.ne.s32.totalorder %s108, %s109
      %p123 = scmp.eq.s32.totalorder %s20, 1
      %p124 = por %p122, %p123
      %p126 = scmp.ne.s32.totalorder %s109, %s125
      %p127 = scmp.eq.s32.totalorder %s20, 0
      %p128 = por %p126, %p127
      %p129 = scmp.le.s32.totalorder 1, %s14
      %p130 = scmp.lt.s32.totalorder %s14, 3
      %p131 = pnand %p129, %p130
      %p132 = pneg %p131
      // Predicated region
      $region9: #{tpu_custom_call.1} parent=5 // pred_check
        _
      $region10: #{tpu_custom_call.1} parent=5 // pred_check_branch
        %134 = sbr.rel (%p131) target = $region12
      $region11: #{tpu_custom_call.1} parent=5 // pred_region
        %s135 = ssub.s32 %s14, 1
      $region12: #{tpu_custom_call.1} parent=5 // pred_fallthru
        _
      %p136 = scmp.lt.s32.totalorder %s14, 2
      // Predicated region
      $region13: #{tpu_custom_call.1} parent=5 // pred_check
        %p137 = pneg %p136
      $region14: #{tpu_custom_call.1} parent=5 // pred_check_branch
        %139 = sbr.rel (%p137) target = $region16
      $region15: #{tpu_custom_call.1} parent=5 // pred_region
        // Predicated region
        $region17: #{tpu_custom_call.1} parent=15 // pred_check
          %p140 = pneg %p57
        $region18: #{tpu_custom_call.1} parent=15 // pred_check_branch
          %142 = sbr.rel (%p140) target = $region20
        $region19: #{tpu_custom_call.1} parent=15 // pred_region
          %s143 = sadd.s32 %s22, %s23
          %s144 = smul.u32 2, %s143
          %p145 = scmp.lt.s32.totalorder %s21, 1
          %s146 = scalar_select %p145, %s21, 1
          %p147 = scmp.lt.s32.totalorder %s144, 1
          %s148 = scalar_select %p147, %s144, 1
          %s149 = smul.addr %s146, 2
          %s150 = sadd.s32 %s148, %s149
          %s151 = scalar_lea.vmem %s0, %s150
          %s152 = sadd.s32 %s22, %s23
          %s153 = smul.u32 2, %s152
        $region20: #{tpu_custom_call.1} parent=15 // pred_fallthru
          _
        // Predicated region
        $region21: #{tpu_custom_call.1} parent=15 // pred_check
          %p154 = pneg %p87
        $region22: #{tpu_custom_call.1} parent=15 // pred_check_branch
          %156 = sbr.rel (%p154) target = $region24
        $region23: #{tpu_custom_call.1} parent=15 // pred_region
          %s157 = sand.u32 %s77, 1
          %s158 = scalar_lea.sflag [#allocation7], %s157
          %s159 = sand.u32 %s77, 1
          %s160 = smul.addr %s159, 8
          %s161 = scalar_lea.vmem [#allocation6], %s160
          %s162 = sadd.s32 %s22, %s23
          %s163 = smul.u32 2, %s162
          %s165 = ssub.s32 128, 128
          %166 = vsyncadd %s158, %s165
          %s167 = smul.addr %s21, 2
          %s168 = sadd.s32 %s163, %s167
          %s169 = smul.addr %s168, 64
          %s170 = scalar_lea.hbm %s1, %s169
          %s172 = sshll.u32 %s161, 4
          %s173 = int_to_ptr.vmem [resolvable:$true] %s172
          %175 = dma.hbm_to_vmem [thread:$0]  %s170, 128, %s173, %s158
        $region24: #{tpu_custom_call.1} parent=15 // pred_fallthru
          _
      $region16: #{tpu_custom_call.1} parent=5 // pred_fallthru
        _
      %p176 = scmp.le.s32.totalorder 1, %s14
      %p177 = scmp.lt.s32.totalorder %s14, 3
      %p178 = pnand %p176, %p177
      %p179 = pneg %p178
      // Predicated region
      $region25: #{tpu_custom_call.1} parent=5 // pred_check
        _
      $region26: #{tpu_custom_call.1} parent=5 // pred_check_branch
        %181 = sbr.rel (%p178) target = $region28
      $region27: #{tpu_custom_call.1} parent=5 // pred_region
        %s182 = ssub.s32 %s14, 1
        %s183 = sand.u32 %s80, 1
        %s184 = scalar_lea.sflag [#allocation7], %s183
        %s185 = sand.u32 %s80, 1
        %s186 = smul.addr %s185, 8
        %s187 = scalar_lea.vmem [#allocation6], %s186
        // Predicated region
        $region29: #{tpu_custom_call.1} parent=27 // pred_check
          %p188 = pneg %p93
        $region30: #{tpu_custom_call.1} parent=27 // pred_check_branch
          %190 = sbr.rel (%p188) target = $region32
        $region31: #{tpu_custom_call.1} parent=27 // pred_region
          %191 = dma.done %s184, 128
        $region32: #{tpu_custom_call.1} parent=27 // pred_fallthru
          _
        %s192 = sadd.s32 %s25, %s26
        %s193 = smul.u32 2, %s192
        %p194 = scmp.lt.s32.totalorder %s24, 1
        %s195 = scalar_select %p194, %s24, 1
        %p196 = scmp.lt.s32.totalorder %s193, 1
        %s197 = scalar_select %p196, %s193, 1
        %s198 = smul.addr %s195, 2
        %s199 = sadd.s32 %s197, %s198
        %s200 = scalar_lea.vmem %s0, %s199
        %p201 = pneg %p63
        %p202 = pneg %p60
        %s203 = sand.u32 %s80, 1
        %s204 = scalar_lea.sflag [#allocation7], %s203
        %s205 = sand.u32 %s80, 1
        %s206 = smul.addr %s205, 8
        %s207 = scalar_lea.vmem [#allocation6], %s206
        %p208 = pneg %p93
        %p209 = pneg %p90
        %p210 = pneg %p121
        %p211 = pneg %p118
        %s212 = sand.u32 %s108, 1
        %s213 = scalar_lea.sflag [#allocation8], %s212
        %s214 = sand.u32 %s108, 1
        %s215 = smul.addr %s214, 4
        %s216 = scalar_lea.vmem [#allocation9], %s215
        %s217 = sadd.s32 %s25, %s26
        %s218 = smul.u32 2, %s217
        %p219 = scmp.lt.s32.totalorder %s24, 1
        %s220 = scalar_select %p219, %s24, 1
        %p221 = scmp.lt.s32.totalorder %s218, 1
        %s222 = scalar_select %p221, %s218, 1
        %s223 = smul.addr %s220, 2
        %s224 = sadd.s32 %s222, %s223
        %s225 = scalar_lea.vmem %s0, %s224
        %s226 = sadd.s32 %s25, %s26
        %s227 = smul.u32 2, %s226
        %s228 = sadd.s32 %s25, %s26
        %s229 = smul.u32 2, %s228
        %p230 = scmp.eq.s32.totalorder %s26, 0
        // Predicated region
        $region33: #{tpu_custom_call.1} parent=27 // pred_check
          %p231 = pneg %p230
        $region34: #{tpu_custom_call.1} parent=27 // pred_check_branch
          %233 = sbr.rel (%p231) target = $region36
        $region35: #{tpu_custom_call.1} parent=27 // pred_region
          %vm234 = vcmask 3072
          %235 = vst.msk [vmem:[#allocation2] sm:$0xf] %vm234, 0.0
          %236 = vst.msk [vmem:[#allocation3] sm:$0xf] %vm234, 0.0
          %237 = vst.msk [vmem:[#allocation4] sm:$0xf] %vm234, 0.0
          %238 = vst.msk [vmem:[#allocation5] sm:$0xf] %vm234, 0.0
        $region36: #{tpu_custom_call.1} parent=27 // pred_fallthru
          _
        %v239 = vld [vmem:[%s187] sm:$0xff]
        %v240 = vld [vmem:[%s225] sm:$0x3]
        %v241 = vunpack.c.0.s8 %v240
        %v242 = vand.u32 %v241, 255
        %vm243 = vcmp.ne.s32.totalorder %v242, 255
        %v245 = vcombine.high %v239, %v239
        %vm247 = vcmask 1043456
        %v248 = vsel %vm247, %v239, -inf
        %v249 = vrot.slane %v248, 4
        %v250 = vmax.f32 %v248, %v249
        %v251 = vrot.slane %v250, 2
        %v252 = vmax.f32 %v250, %v251
        %v253 = vrot.slane %v252, 1
        %v254 = vmax.f32 %v252, %v253
        %v255 = vsel %vm247, %v245, -inf
        %v256 = vrot.slane %v255, 4
        %v257 = vmax.f32 %v255, %v256
        %v258 = vrot.slane %v257, 2
        %v259 = vmax.f32 %v257, %v258
        %v260 = vrot.slane %v259, 1
        %v261 = vmax.f32 %v259, %v260
        %v264 = vcombine.low %v254, %v261
        %v266 = vsub.f32 %v239, %v264
        %v267 = vmul.f32 %v266, 1.442695
        %v268 = vpow.pop %v267
        %v270 = vcombine.high %v268, %v268
        %v272 = vsel %vm247, %v268, 0.0
        %v273 = vrot.slane %v272, 4
        %v274 = vadd.f32 %v272, %v273
        %v275 = vrot.slane %v274, 2
        %v276 = vadd.f32 %v274, %v275
        %v277 = vrot.slane %v276, 1
        %v278 = vadd.f32 %v276, %v277
        %v279 = vsel %vm247, %v270, 0.0
        %v280 = vrot.slane %v279, 4
        %v281 = vadd.f32 %v279, %v280
        %v282 = vrot.slane %v281, 2
        %v283 = vadd.f32 %v281, %v282
        %v284 = vrot.slane %v283, 1
        %v285 = vadd.f32 %v283, %v284
        %v286 = vrcp.pop %v278
        %v287 = vrcp.pop %v285
        %v288 = vmul.f32 %v278, %v286
        %v289 = vmul.f32 %v285, %v287
        %v290 = vsub.f32 2.0, %v288
        %v291 = vsub.f32 2.0, %v289
        %v292 = vmul.f32 %v286, %v290
        %v293 = vmul.f32 %v287, %v291
        %v294 = vmul.f32 %v278, %v292
        %v295 = vmul.f32 %v285, %v293
        %v296 = vsub.f32 2.0, %v294
        %v297 = vsub.f32 2.0, %v295
        %v298 = vmul.f32 %v292, %v296
        %v299 = vmul.f32 %v293, %v297
        %v302 = vcombine.low %v298, %v299
        %v304 = vmul.f32 %v268, %v302
        %v305 = vsel %vm243, 1.0, 0.0
        %v306 = vlaneseq
        %v307 = vshrl.u32 %v306, 7
        %v308 = vlaneseq
        %v309 = vshrl.u32 %v308, 7
        %v310 = vsub.s32 0, %v309
        %v311 = vrot.slane %v242, %v310
        %v312 = vlaneseq
        %v313 = vshrl.u32 %v312, 7
        %v314 = vsub.s32 4, %v313
        %v315 = vrot.slane %v242, %v314
        %v316 = vlaneseq
        %v317 = vshrl.u32 %v316, 7
        %v318 = vsub.s32 0, %v317
        %v319 = vrot.slane %v311, %v318
        %v320 = vlaneseq
        %v321 = vshrl.u32 %v320, 7
        %v322 = vsub.s32 0, %v321
        %v323 = vrot.slane %v315, %v322
        %vm324 = vcmp.eq.s32.totalorder %v307, %v319
        %vm325 = vcmp.eq.s32.totalorder %v307, %v323
        %v326 = vsel %vm243, 1, 0
        %v327 = vlaneseq
        %v328 = vshrl.u32 %v327, 7
        %v329 = vsub.s32 0, %v328
        %v330 = vrot.slane %v326, %v329
        %v331 = vlaneseq
        %v332 = vshrl.u32 %v331, 7
        %v333 = vsub.s32 4, %v332
        %v334 = vrot.slane %v326, %v333
        %v335 = vlaneseq
        %v336 = vshrl.u32 %v335, 7
        %v337 = vsub.s32 0, %v336
        %v338 = vrot.slane %v330, %v337
        %v339 = vlaneseq
        %v340 = vshrl.u32 %v339, 7
        %v341 = vsub.s32 0, %v340
        %v342 = vrot.slane %v334, %v341
        %vm343 = vcmp.eq.s32.totalorder %v338, 1
        %vm344 = vcmp.eq.s32.totalorder %v342, 1
        %vm345 = vmand %vm324, %vm343
        %vm346 = vmand %vm325, %vm344
        %v347 = vsel %vm345, 1.0, 0.0
        %v348 = vsel %vm346, 1.0, 0.0
        %v350 = vcombine.high %v304, %v304
        %v352 = vsub.f32 %v347, %v304
        %v353 = vsub.f32 %v348, %v350
        %v354 = vmul.f32 %v352, %v352
        %v355 = vmul.f32 %v353, %v353
        %v356 = vsub.f32 1.00001, %v354
        %v357 = vsub.f32 1.00001, %v355
        %v358 = vlog2.pop %v356
        %v359 = vmul.f32 %v358, 0.6931472
        %v360 = vlog2.pop %v357
        %v361 = vmul.f32 %v360, 0.6931472
        %v362 = vsub.f32 %v354, %v359
        %v363 = vsub.f32 %v355, %v361
        %v364 = vadd.f32 %v354, 1.00001
        %v365 = vadd.f32 %v355, 1.00001
        %v366 = vlog2.pop %v364
        %v367 = vmul.f32 %v366, 0.6931472
        %v368 = vlog2.pop %v365
        %v369 = vmul.f32 %v368, 0.6931472
        %v370 = vadd.f32 %v362, %v367
        %v371 = vadd.f32 %v363, %v369
        %v373 = vlaneseq
        %v374 = vshrl.u32 %v373, 7
        %v375 = vsub.s32 0, %v374
        %v376 = vrot.slane %v305, %v375
        %v377 = vlaneseq
        %v378 = vshrl.u32 %v377, 7
        %v379 = vsub.s32 4, %v378
        %v380 = vrot.slane %v305, %v379
        %v383 = vlaneseq
        %v384 = vshrl.u32 %v383, 7
        %v385 = vsub.s32 0, %v384
        %v386 = vrot.slane %v376, %v385
        %v387 = vlaneseq
        %v388 = vshrl.u32 %v387, 7
        %v389 = vsub.s32 0, %v388
        %v390 = vrot.slane %v380, %v389
        %v393 = vcombine.low %v386, %v390
        %v395 = vmul.f32 %v304, %v393
        %v396 = vld [vmem:[#allocation2] sm:$0xf]
        %v397 = vsel %vm247, %v347, 0.0
        %v398 = vsel %vm247, %v348, 0.0
        %v399 = vadd.f32 %v397, %v398
        %400 = vadd.xlane.f32.xlu0 %v399
        %v401 = vpop.xlane.xlu0 %400
        %v402 = vadd.f32 %v396, %v401
        %vm403 = vcmask 3072
        %404 = vst.msk [vmem:[#allocation2] sm:$0xf] %vm403, %v402
        %v405 = vld [vmem:[#allocation3] sm:$0xf]
        %v408 = vcombine.low %v347, %v348
        %v410 = vmul.f32 %v304, %v408
        %v412 = vcombine.high %v410, %v410
        %v414 = vsel %vm247, %v410, 0.0
        %v415 = vsel %vm247, %v412, 0.0
        %v416 = vadd.f32 %v414, %v415
        %417 = vadd.xlane.f32.xlu0 %v416
        %v418 = vpop.xlane.xlu0 %417
        %v419 = vadd.f32 %v405, %v418
        %420 = vst.msk [vmem:[#allocation3] sm:$0xf] %vm403, %v419
        %v421 = vld [vmem:[#allocation4] sm:$0xf]
        %v423 = vcombine.high %v395, %v395
        %v425 = vsel %vm247, %v395, 0.0
        %v426 = vsel %vm247, %v423, 0.0
        %v427 = vadd.f32 %v425, %v426
        %428 = vadd.xlane.f32.xlu0 %v427
        %v429 = vpop.xlane.xlu0 %428
        %v430 = vadd.f32 %v421, %v429
        %431 = vst.msk [vmem:[#allocation4] sm:$0xf] %vm403, %v430
        %v432 = vld [vmem:[#allocation5] sm:$0xf]
        %v433 = vadd.f32 %v386, %v395
        %v434 = vadd.f32 %v390, %v423
        %v435 = vadd.f32 %v433, %v347
        %v436 = vadd.f32 %v434, %v348
        %v437 = vmul.f32 %v435, %v370
        %v438 = vmul.f32 %v436, %v371
        %v439 = vsel %vm247, %v437, 0.0
        %v440 = vsel %vm247, %v438, 0.0
        %v441 = vadd.f32 %v439, %v440
        %442 = vadd.xlane.f32.xlu0 %v441
        %v443 = vpop.xlane.xlu0 %442
        %v444 = vadd.f32 %v432, %v443
        %445 = vst.msk [vmem:[#allocation5] sm:$0xf] %vm403, %v444
        // Predicated region
        $region37: #{tpu_custom_call.1} parent=27 // pred_check
          %p446 = pneg %p230
        $region38: #{tpu_custom_call.1} parent=27 // pred_check_branch
          %448 = sbr.rel (%p446) target = $region40
        $region39: #{tpu_custom_call.1} parent=27 // pred_region
          %v449 = vld [vmem:[#allocation2] sm:$0xf]
          %450 = vst.msk [vmem:[%s216] sm:$0xf] %vm403, %v449
          %v451 = vld [vmem:[#allocation3] sm:$0xf]
          %453 = vrot.lane.b32.xlu0 %v451, 1
          %v454 = vpop.permute.xlu0 %453
          %vm456 = vcmask 11272
          %457 = vst.msk [vmem:[%s216] sm:$0xf] %vm456, %v454
          %v458 = vld [vmem:[#allocation4] sm:$0xf]
          %460 = vrot.lane.b32.xlu0 %v458, 2
          %v461 = vpop.permute.xlu0 %460
          %vm463 = vcmask 19472
          %464 = vst.msk [vmem:[%s216] sm:$0xf] %vm463, %v461
          %v465 = vld [vmem:[#allocation5] sm:$0xf]
          %467 = vrot.lane.b32.xlu0 %v465, 3
          %v468 = vpop.permute.xlu0 %467
          %vm470 = vcmask 27672
          %471 = vst.msk [vmem:[%s216] sm:$0xf] %vm470, %v468
        $region40: #{tpu_custom_call.1} parent=27 // pred_fallthru
          _
        %s472 = sand.u32 %s108, 1
        %s473 = scalar_lea.sflag [#allocation8], %s472
        %s474 = sand.u32 %s108, 1
        %s475 = smul.addr %s474, 4
        %s476 = scalar_lea.vmem [#allocation9], %s475
        // Predicated region
        $region41: #{tpu_custom_call.1} parent=27 // pred_check
          %p477 = pneg %p118
        $region42: #{tpu_custom_call.1} parent=27 // pred_check_branch
          %479 = sbr.rel (%p477) target = $region44
        $region43: #{tpu_custom_call.1} parent=27 // pred_region
          %s481 = ssub.s32 64, 64
          %482 = vsyncadd %s473, %s481
          %s483 = sadd.s32 %s25, %s24
          %s484 = smul.addr %s483, 64
          %s485 = scalar_lea.hbm %s2, %s484
          %s487 = sshll.u32 %s476, 4
          %s488 = int_to_ptr.vmem [resolvable:$true] %s487
          %490 = dma.vmem_to_hbm [thread:$0]  %s488, 64, %s485, %s473
        $region44: #{tpu_custom_call.1} parent=27 // pred_fallthru
          _
      $region28: #{tpu_custom_call.1} parent=5 // pred_fallthru
        _
      %p491 = scmp.le.s32.totalorder 2, %s14
      // Predicated region
      $region45: #{tpu_custom_call.1} parent=5 // pred_check
        %p492 = pneg %p491
      $region46: #{tpu_custom_call.1} parent=5 // pred_check_branch
        %494 = sbr.rel (%p492) target = $region48
      $region47: #{tpu_custom_call.1} parent=5 // pred_region
        %s495 = ssub.s32 %s14, 2
        // Predicated region
        $region49: #{tpu_custom_call.1} parent=47 // pred_check
          %p496 = pneg %p124
        $region50: #{tpu_custom_call.1} parent=47 // pred_check_branch
          %498 = sbr.rel (%p496) target = $region52
        $region51: #{tpu_custom_call.1} parent=47 // pred_region
          %s499 = sand.u32 %s109, 1
          %s500 = scalar_lea.sflag [#allocation8], %s499
          %s501 = sand.u32 %s109, 1
          %s502 = smul.addr %s501, 4
          %s503 = scalar_lea.vmem [#allocation9], %s502
          %504 = dma.done %s500, 64
        $region52: #{tpu_custom_call.1} parent=47 // pred_fallthru
          _
      $region48: #{tpu_custom_call.1} parent=5 // pred_fallthru
        _
    $region6: #{tpu_custom_call.1} parent=1 // loop_footer
      %s18 = sadd.s32 1, %s14
    $region7: #{tpu_custom_call.1} parent=1 // loop_footer_branch
      %13 = sbr.rel target = $region3
    $region8: #{tpu_custom_call.1} parent=1 // loop_exit
      _
    %505 = vsyncpa [#allocation7], 1
    %s506 = scalar_lea.sflag [#allocation7], 1
    %507 = vsyncpa %s506, 1
    %508 = vsyncpa [#allocation8], 1
    %s509 = scalar_lea.sflag [#allocation8], 1
    %510 = vsyncpa %s509, 1

</llo_original>
